<compile_context>
chip_gen: v6e
topology: v6e:2x2x1
jax: 0.10.0
libtpu: 0.0.40
codegen_flags: <defaults>
</compile_context>

<pallas_src>
import numpy as np

import jax
import jax.numpy as jnp
from jax.experimental import pallas as pl
from jax.experimental.pallas import tpu as pltpu

# Column layout of the per-output-channel constants table (C_out, 7).
_C_SIG, _C_ANCH, _C_ISX, _C_ISY, _C_MUL, _C_BIAS, _C_ISWH = range(7)
_N_CONST = 7


def _yolo_kernel(x_ref, w_ref, c_ref, xy_ref, o_ref):
    """One (batch, pixel-tile) grid step.

    x_ref  : (1, C_in, t_pix)   NCHW feature slab, pixels on the lane axis
    w_ref  : (C_out, C_in)      folded 1x1-conv weight
    c_ref  : (C_out, 7)         per-channel decode constants (masks/anchor/bias)
    xy_ref : (2, t_pix)         x-grid / y-grid for the pixels of this tile
    o_ref  : (1, C_out, t_pix)  decoded output, lane-dense (pixels last)
    """
    x = x_ref[0]                                          # (C_in, t_pix)
    # 1x1 conv == channel matmul on the MXU; pixel dim = 128-lane axis.
    acc = jnp.dot(w_ref[...], x, preferred_element_type=jnp.float32)
    acc = acc + c_ref[:, _C_BIAS:_C_BIAS + 1]             # (C_out, t_pix)

    sig_mask = c_ref[:, _C_SIG:_C_SIG + 1] > 0.5          # (C_out, 1)
    wh_mask = c_ref[:, _C_ISWH:_C_ISWH + 1] > 0.5
    anch = c_ref[:, _C_ANCH:_C_ANCH + 1]
    is_x = c_ref[:, _C_ISX:_C_ISX + 1]
    is_y = c_ref[:, _C_ISY:_C_ISY + 1]
    mul = c_ref[:, _C_MUL:_C_MUL + 1]

    # sigmoid on channels {0,1} and [4, ch_box)   (EUP slot — effectively free)
    acc = jnp.where(sig_mask, jax.nn.sigmoid(acc), acc)
    # grid offsets on channels 0/1  (is_x/is_y are 0 elsewhere)
    acc = acc + is_x * xy_ref[0:1, :] + is_y * xy_ref[1:2, :]
    # channels 2/3: v += anchor * exp(v)   (anch == 0 elsewhere -> adds 0)
    acc = acc + anch * jnp.exp(jnp.where(wh_mask, acc, 0.0))
    # channel 4: * stride   (mul == 1 elsewhere)
    acc = acc * mul

    o_ref[0] = acc


def _pick_pixel_tile(hw, batch, cap=1024):
    """Largest multiple of 128 dividing H*W (capped), else the full pixel axis."""
    t = None
    m = 128
    while m <= min(hw, cap):
        if hw % m == 0:
            t = m
        m += 128
    if t is None:
        t = hw  # full-extent block is always legal
    # v7x has 2 TensorCores: keep at least 2 parallel grid steps when possible.
    if batch * (hw // t) < 2 and t % 256 == 0:
        t //= 2
    return t


def yolo_forward(x_nchw, conv_w, conv_b, anchors_selected, num_class, stride):
    """x_nchw: (B, C_in, H, W) float32.  Returns (B, A*H*W, ch_box)."""
    B, C_in, H, W = x_nchw.shape
    A = len(anchors_selected)
    ch_box = 4 + 1 + num_class
    C_out = A * ch_box
    assert conv_w.shape == (C_out, C_in, 1, 1)
    HW = H * W

    t_pix = _pick_pixel_tile(HW, B)
    # TODO(synk): a ragged pixel axis (HW not a multiple of 128 and too large
    # for one tile) would need a cdiv grid + masked tail; not needed here.
    assert HW % t_pix == 0

    # Kernel consumes NCHW directly: this reshape is free (contiguous).
    x3d = x_nchw.reshape(B, C_in, HW).astype(jnp.float32)
    w2d = conv_w.reshape(C_out, C_in).astype(jnp.float32)

    # Per-output-channel decode constants, precomputed on host (removes all
    # in-kernel integer div/mod and full-width iotas).
    consts_np = np.zeros((C_out, _N_CONST), np.float32)
    for a in range(A):
        for cc in range(ch_box):
            r = a * ch_box + cc
            consts_np[r, _C_SIG] = 1.0 if (cc < 2 or cc >= 4) else 0.0
            if cc == 2:
                consts_np[r, _C_ANCH] = float(anchors_selected[a][0])
            elif cc == 3:
                consts_np[r, _C_ANCH] = float(anchors_selected[a][1])
            consts_np[r, _C_ISX] = 1.0 if cc == 0 else 0.0
            consts_np[r, _C_ISY] = 1.0 if cc == 1 else 0.0
            consts_np[r, _C_MUL] = float(stride) if cc == 4 else 1.0
            consts_np[r, _C_ISWH] = 1.0 if cc in (2, 3) else 0.0
    consts = jnp.asarray(consts_np)
    consts = consts.at[:, _C_BIAS].set(conv_b.astype(jnp.float32))

    # Pixel -> (x_grid, y_grid) lookup, (2, H*W), tiled along the pixel axis.
    xg = jnp.tile(jnp.arange(W, dtype=jnp.float32), H)
    yg = jnp.repeat(jnp.arange(H, dtype=jnp.float32), W)
    xy = jnp.stack([xg, yg], axis=0)

    out3d = pl.pallas_call(
        _yolo_kernel,
        out_shape=jax.ShapeDtypeStruct((B, C_out, HW), jnp.float32),
        grid_spec=pltpu.PrefetchScalarGridSpec(
            num_scalar_prefetch=0,
            grid=(B, HW // t_pix),
            in_specs=[
                pl.BlockSpec((1, C_in, t_pix), lambda b, p: (b, 0, p)),
                pl.BlockSpec((C_out, C_in), lambda b, p: (0, 0)),
                pl.BlockSpec((C_out, _N_CONST), lambda b, p: (0, 0)),
                pl.BlockSpec((2, t_pix), lambda b, p: (0, p)),
            ],
            out_specs=pl.BlockSpec((1, C_out, t_pix), lambda b, p: (b, 0, p)),
        ),
        compiler_params=pltpu.CompilerParams(
            dimension_semantics=("parallel", "parallel"),
            vmem_limit_bytes=32 * 1024 * 1024),
    )(x3d, w2d, consts, xy)

    # Kernel emits (B, A*ch_box, H*W) lane-dense; present the module's return
    # layout (B, A*H*W, ch_box).  This single small permute is the only
    # remaining wrapper-side XLA pass.
    pred = out3d.reshape(B, A, ch_box, HW)
    pred = jnp.transpose(pred, (0, 1, 3, 2))
    return pred.reshape(B, A * HW, ch_box)


def yolo_forward_ref(x_nchw, conv_w, conv_b, anchors_selected, num_class, stride):
    """Pure-JAX reference mirroring the PyTorch forward (labels=None)."""
    B, C_in, H, W = x_nchw.shape
    A = len(anchors_selected)
    ch_box = 4 + 1 + num_class
    w2d = conv_w.reshape(A * ch_box, C_in)
    out = jnp.einsum('bchw,oc->bohw', x_nchw, w2d) + conv_b[None, :, None, None]
    out = out.reshape(B, A, ch_box, H, W).transpose(0, 1, 3, 4, 2)  # (B,A,H,W,ch)
    sig_idx = jnp.array([0, 1] + list(range(4, ch_box)))
    out = out.at[..., sig_idx].set(jax.nn.sigmoid(out[..., sig_idx]))
    xg = jnp.broadcast_to(jnp.arange(W, dtype=jnp.float32), (B, A, H, W))
    yg = jnp.broadcast_to(jnp.arange(H, dtype=jnp.float32).reshape(H, 1),
                          (B, A, H, W))
    wa = jnp.asarray([a[0] for a in anchors_selected], jnp.float32).reshape(1, A, 1, 1)
    ha = jnp.asarray([a[1] for a in anchors_selected], jnp.float32).reshape(1, A, 1, 1)
    pred = out
    pred = pred.at[..., 0].add(xg)
    pred = pred.at[..., 1].add(yg)
    pred = pred.at[..., 2].add(jnp.exp(pred[..., 2]) * wa)
    pred = pred.at[..., 3].add(jnp.exp(pred[..., 3]) * ha)
    pred = pred.at[..., 4].multiply(float(stride))
    return pred.reshape(B, -1, ch_box)


if __name__ == "__main__":
    # Synthetic config mirroring the module's __init__.
    config = {
        'N_CLASSES': 2,
        'ANCHORS': [(10, 13), (16, 30), (33, 23), (30, 61), (62, 45), (59, 119)],
        'ANCHORS_INDEX': [[3, 4, 5], [0, 1, 2]],
    }
    layer_num = 0
    strides = [16, 8]
    stride = strides[layer_num]
    num_class = config['N_CLASSES']
    all_anchors_grid = [(w / stride, h / stride) for w, h in config['ANCHORS']]
    anchors_index = config['ANCHORS_INDEX'][layer_num]
    anchors_selected = [all_anchors_grid[i] for i in anchors_index]
    num_anchors = len(anchors_index)
    ch_box = 4 + 1 + num_class

    B, C_in, H, W = 2, 4, 16, 16
    C_out = num_anchors * ch_box

    key = jax.random.PRNGKey(0)
    kx, kw, kb = jax.random.split(key, 3)
    x = jax.random.normal(kx, (B, C_in, H, W), jnp.float32)
    conv_w = 0.1 * jax.random.normal(kw, (C_out, C_in, 1, 1), jnp.float32)
    conv_b = 0.1 * jax.random.normal(kb, (C_out,), jnp.float32)

    pred = yolo_forward(x, conv_w, conv_b, anchors_selected, num_class, stride)
    pred = jax.block_until_ready(pred)

    ref = yolo_forward_ref(x, conv_w, conv_b, anchors_selected, num_class, stride)
    assert pred.shape == (B, num_anchors * H * W, ch_box)
    assert jnp.allclose(pred, ref, atol=1e-5, rtol=1e-5), "mismatch vs reference"

    print("KERNEL_OK")
</pallas_src>

<mosaic_0001>
module attributes {stable_mosaic.version = 11 : i64} {
  func.func @_yolo_kernel(%arg0: i32, %arg1: i32, %arg2: memref<1x4x256xf32, #tpu.memory_space<vmem>>, %arg3: memref<21x4xf32, #tpu.memory_space<vmem>>, %arg4: memref<21x7xf32, #tpu.memory_space<vmem>>, %arg5: memref<2x256xf32, #tpu.memory_space<vmem>>, %arg6: memref<1x21x256xf32, #tpu.memory_space<vmem>>) attributes {dimension_semantics = [#tpu.dimension_semantics<parallel>, #tpu.dimension_semantics<parallel>], iteration_bounds = array<i64: 2, 1>, scalar_prefetch = 0 : i64, scratch_operands = 0 : i64, tpu.core_type = #tpu.core_type<tc>, window_params = [{transform_indices = @transform_0, window_bounds = array<i64: 1, 4, 256>}, {pipeline_mode = #tpu.pipeline_mode<synchronous>, transform_indices = @transform_1, window_bounds = array<i64: 21, 4>}, {pipeline_mode = #tpu.pipeline_mode<synchronous>, transform_indices = @transform_2, window_bounds = array<i64: 21, 7>}, {transform_indices = @transform_3, window_bounds = array<i64: 2, 256>}, {transform_indices = @transform_4, window_bounds = array<i64: 1, 21, 256>}]} {
    %c0 = arith.constant 0 : index
    %c0_0 = arith.constant 0 : index
    %c0_1 = arith.constant 0 : index
    %0 = vector.load %arg2[%c0, %c0_0, %c0_1] : memref<1x4x256xf32, #tpu.memory_space<vmem>>, vector<1x4x256xf32>
    %1 = vector.shape_cast %0 : vector<1x4x256xf32> to vector<4x256xf32>
    %c0_2 = arith.constant 0 : index
    %c0_3 = arith.constant 0 : index
    %2 = vector.load %arg3[%c0_2, %c0_3] : memref<21x4xf32, #tpu.memory_space<vmem>>, vector<21x4xf32>
    %cst = arith.constant dense<0.000000e+00> : vector<21x256xf32>
    %3 = tpu.matmul %2, %1, %cst {dimension_numbers = #tpu.dot_dimension_numbers<[1], [0], [0], [1], [0, 0, 1, 1], [], []>} : vector<21x4xf32>, vector<4x256xf32>, vector<21x256xf32> -> vector<21x256xf32>
    %c0_4 = arith.constant 0 : index
    %c5 = arith.constant 5 : index
    %4 = vector.load %arg4[%c0_4, %c5] : memref<21x7xf32, #tpu.memory_space<vmem>>, vector<21x1xf32>
    %5 = vector.broadcast %4 : vector<21x1xf32> to vector<21x256xf32>
    %6 = arith.addf %3, %5 : vector<21x256xf32>
    %c0_5 = arith.constant 0 : index
    %c0_6 = arith.constant 0 : index
    %7 = vector.load %arg4[%c0_5, %c0_6] : memref<21x7xf32, #tpu.memory_space<vmem>>, vector<21x1xf32>
    %cst_7 = arith.constant 5.000000e-01 : f32
    %8 = vector.broadcast %cst_7 : f32 to vector<21x1xf32>
    %9 = arith.cmpf ogt, %7, %8 : vector<21x1xf32>
    %c0_8 = arith.constant 0 : index
    %c6 = arith.constant 6 : index
    %10 = vector.load %arg4[%c0_8, %c6] : memref<21x7xf32, #tpu.memory_space<vmem>>, vector<21x1xf32>
    %cst_9 = arith.constant 5.000000e-01 : f32
    %11 = vector.broadcast %cst_9 : f32 to vector<21x1xf32>
    %12 = arith.cmpf ogt, %10, %11 : vector<21x1xf32>
    %c0_10 = arith.constant 0 : index
    %c1 = arith.constant 1 : index
    %13 = vector.load %arg4[%c0_10, %c1] : memref<21x7xf32, #tpu.memory_space<vmem>>, vector<21x1xf32>
    %c0_11 = arith.constant 0 : index
    %c2 = arith.constant 2 : index
    %14 = vector.load %arg4[%c0_11, %c2] : memref<21x7xf32, #tpu.memory_space<vmem>>, vector<21x1xf32>
    %c0_12 = arith.constant 0 : index
    %c3 = arith.constant 3 : index
    %15 = vector.load %arg4[%c0_12, %c3] : memref<21x7xf32, #tpu.memory_space<vmem>>, vector<21x1xf32>
    %c0_13 = arith.constant 0 : index
    %c4 = arith.constant 4 : index
    %16 = vector.load %arg4[%c0_13, %c4] : memref<21x7xf32, #tpu.memory_space<vmem>>, vector<21x1xf32>
    %17 = arith.negf %6 : vector<21x256xf32>
    %18 = math.exp %17 : vector<21x256xf32>
    %cst_14 = arith.constant 1.000000e+00 : f32
    %19 = vector.broadcast %cst_14 : f32 to vector<21x256xf32>
    %20 = arith.addf %19, %18 : vector<21x256xf32>
    %21 = arith.divf %19, %20 : vector<21x256xf32>
    %22 = vector.shape_cast %9 : vector<21x1xi1> to vector<21x1xi1>
    %23 = vector.broadcast %22 : vector<21x1xi1> to vector<21x256xi1>
    %24 = arith.select %23, %21, %6 : vector<21x256xi1>, vector<21x256xf32>
    %c0_15 = arith.constant 0 : index
    %c0_16 = arith.constant 0 : index
    %25 = vector.load %arg5[%c0_15, %c0_16] : memref<2x256xf32, #tpu.memory_space<vmem>>, vector<1x256xf32>
    %26 = vector.broadcast %14 : vector<21x1xf32> to vector<21x256xf32>
    %27 = vector.broadcast %25 : vector<1x256xf32> to vector<21x256xf32>
    %28 = arith.mulf %26, %27 : vector<21x256xf32>
    %29 = arith.addf %24, %28 : vector<21x256xf32>
    %c1_17 = arith.constant 1 : index
    %c0_18 = arith.constant 0 : index
    %30 = vector.load %arg5[%c1_17, %c0_18] : memref<2x256xf32, #tpu.memory_space<vmem>>, vector<1x256xf32>
    %31 = vector.broadcast %15 : vector<21x1xf32> to vector<21x256xf32>
    %32 = vector.broadcast %30 : vector<1x256xf32> to vector<21x256xf32>
    %33 = arith.mulf %31, %32 : vector<21x256xf32>
    %34 = arith.addf %29, %33 : vector<21x256xf32>
    %cst_19 = arith.constant 0.000000e+00 : f32
    %35 = vector.shape_cast %12 : vector<21x1xi1> to vector<21x1xi1>
    %36 = vector.broadcast %35 : vector<21x1xi1> to vector<21x256xi1>
    %37 = vector.broadcast %cst_19 : f32 to vector<21x256xf32>
    %38 = arith.select %36, %34, %37 : vector<21x256xi1>, vector<21x256xf32>
    %39 = math.exp %38 : vector<21x256xf32>
    %40 = vector.broadcast %13 : vector<21x1xf32> to vector<21x256xf32>
    %41 = arith.mulf %40, %39 : vector<21x256xf32>
    %42 = arith.addf %34, %41 : vector<21x256xf32>
    %43 = vector.broadcast %16 : vector<21x1xf32> to vector<21x256xf32>
    %44 = arith.mulf %42, %43 : vector<21x256xf32>
    %c0_20 = arith.constant 0 : index
    %c0_21 = arith.constant 0 : index
    %c0_22 = arith.constant 0 : index
    %45 = vector.load %arg6[%c0_20, %c0_21, %c0_22] : memref<1x21x256xf32, #tpu.memory_space<vmem>>, vector<1x21x256xf32>
    %46 = vector.shape_cast %45 : vector<1x21x256xf32> to vector<21x256xf32>
    %47 = vector.shape_cast %44 : vector<21x256xf32> to vector<1x21x256xf32>
    tpu.vector_store %arg6[%c0_20, %c0_21, %c0_22], %47 {strides = array<i32>} : memref<1x21x256xf32, #tpu.memory_space<vmem>>, vector<1x21x256xf32>,
    return
  }
  func.func @transform_0(%arg0: i32, %arg1: i32) -> (i32, i32, i32) {
    %c0_i32 = arith.constant 0 : i32
    %c0_i32_0 = arith.constant 0 : i32
    return %arg0, %c0_i32, %arg1 : i32, i32, i32
  }
  func.func @transform_1(%arg0: i32, %arg1: i32) -> (i32, i32) {
    %c0_i32 = arith.constant 0 : i32
    %c0_i32_0 = arith.constant 0 : i32
    %c0_i32_1 = arith.constant 0 : i32
    return %c0_i32, %c0_i32_0 : i32, i32
  }
  func.func @transform_2(%arg0: i32, %arg1: i32) -> (i32, i32) {
    %c0_i32 = arith.constant 0 : i32
    %c0_i32_0 = arith.constant 0 : i32
    %c0_i32_1 = arith.constant 0 : i32
    return %c0_i32, %c0_i32_0 : i32, i32
  }
  func.func @transform_3(%arg0: i32, %arg1: i32) -> (i32, i32) {
    %c0_i32 = arith.constant 0 : i32
    %c0_i32_0 = arith.constant 0 : i32
    return %c0_i32, %arg1 : i32, i32
  }
  func.func @transform_4(%arg0: i32, %arg1: i32) -> (i32, i32, i32) {
    %c0_i32 = arith.constant 0 : i32
    %c0_i32_0 = arith.constant 0 : i32
    return %arg0, %c0_i32, %arg1 : i32, i32, i32
  }
}

</mosaic_0001>

<llo_original>
// kernel: tpu_custom_call.1
$region0: #{tpu_custom_call.1}
  #allocation0 [shape = 'u32[]', space=smem, size = 0x4, offset = 0x4, fixed_abs, tag = 'smem constant byte address 0x4 - core index']
  #allocation1 [shape = 'u32[144,128]{1,0:T(1,128)}', space=vmem, size = 0x12000, scoped, tag = 'internal scratch']
  %s0 = inlined_call_operand.vmem [shape: f32[2,4,256], index: 0, kind: input, shape index: {}]
  %s1 = inlined_call_operand.vmem [shape: f32[21,4], index: 1, kind: input, shape index: {}]
  %s2 = inlined_call_operand.vmem [shape: f32[21,7], index: 2, kind: input, shape index: {}]
  %s3 = inlined_call_operand.vmem [shape: f32[2,256], index: 3, kind: input, shape index: {}]
  %s4 = inlined_call_operand.vmem [shape: f32[2,21,256], index: 4, kind: output, shape index: {}]
  %s5 = sld [smem:[#allocation0]]
  $region49: #{tpu_custom_call.1} parent=0
    _
  %s7 = ssub.s32 1, %s5
  %s8 = scalar_select 0, %s7, %s5
  loop: start=0, step=1, limit=4
  $region2: #{tpu_custom_call.1} parent=0 // loop_pre_header
    _
  $region3: #{tpu_custom_call.1} parent=0 // loop_header
    %s10 = sphi 0, %s14
    %p11 = scmp.ge.s32.totalorder %s10, 4
    %s17 = sphi 0, %s29
    %s18 = sphi 0, %s25
    %s19 = sphi 0, %s17
    %s20 = sphi 0, %s18
    %s21 = sphi 0, %s19
    %s22 = sphi 0, %s20
    %s34 = sphi 0, %s36
    %s37 = sphi 0, %s34
    %s38 = sphi 0, %s37
    %s54 = sphi 0, %s38
    %s58 = sphi 0, %s58
    %s60 = sphi 0, %s58
    %s61 = sphi 0, %s60
    %s75 = sphi 0, %s61
    %s79 = sphi 0, %s79
    %s81 = sphi 0, %s79
    %s82 = sphi 0, %s81
    %s96 = sphi 0, %s82
    %s102 = sphi 0, %s104
    %s105 = sphi 0, %s102
    %s106 = sphi 0, %s105
    %s122 = sphi 0, %s106
    %s130 = sphi 0, %s132
    %s133 = sphi 0, %s130
    %s134 = sphi 0, %s133
    %s150 = sphi 0, %s134
  $region4: #{tpu_custom_call.1} parent=0 // loop_header_branch
    %13 = sbr.rel (%p11) target = $region8
  $region5: #{tpu_custom_call.1} parent=0 // loop_body
    %s15 = ssub.s32 %s10, 1
    %s16 = ssub.s32 %s10, 2
    %s23 = sadd.s32 1, %s18
    %p24 = scmp.ge.s32.totalorder %s23, 1
    %s25 = scalar_select %p24, 0, %s23
    %s26 = sadd.s32 1, %s17
    %s27 = scalar_select %p24, %s26, %s17
    %p28 = scmp.ge.s32.totalorder %s27, 2
    %s29 = scalar_select %p28, 0, %s27
    %s30 = ssub.s32 %s17, %s29
    %s31 = ssub.s32 %s18, %s25
    %s32 = sor.u32 %s30, %s31
    %p33 = scmp.eq.s32.totalorder %s32, 0
    %s35 = sadd.s32 %s34, 1
    %s36 = scalar_select %p33, %s34, %s35
    %p39 = pneg %p33
    %p40 = scmp.eq.s32.totalorder %s10, 1
    %p41 = por %p39, %p40
    %p42 = scmp.ne.s32.totalorder %s34, %s37
    %p43 = scmp.eq.s32.totalorder %s10, 0
    %p44 = por %p42, %p43
    %p45 = scmp.ne.s32.totalorder %s34, %s37
    %p46 = scmp.eq.s32.totalorder %s15, 1
    %p47 = por %p45, %p46
    %p48 = scmp.ne.s32.totalorder %s37, %s38
    %p49 = scmp.eq.s32.totalorder %s15, 0
    %p50 = por %p48, %p49
    %p51 = scmp.ne.s32.totalorder %s37, %s38
    %p52 = scmp.eq.s32.totalorder %s16, 1
    %p53 = por %p51, %p52
    %p55 = scmp.ne.s32.totalorder %s38, %s54
    %p56 = scmp.eq.s32.totalorder %s16, 0
    %p57 = por %p55, %p56
    %s59 = sadd.s32 %s58, 1
    %p62 = scmp.eq.s32.totalorder %s10, 1
    %p63 = scmp.ne.s32.totalorder %s58, %s60
    %p64 = scmp.eq.s32.totalorder %s10, 0
    %p65 = por %p63, %p64
    %p66 = scmp.ne.s32.totalorder %s58, %s60
    %p67 = scmp.eq.s32.totalorder %s15, 1
    %p68 = por %p66, %p67
    %p69 = scmp.ne.s32.totalorder %s60, %s61
    %p70 = scmp.eq.s32.totalorder %s15, 0
    %p71 = por %p69, %p70
    %p72 = scmp.ne.s32.totalorder %s60, %s61
    %p73 = scmp.eq.s32.totalorder %s16, 1
    %p74 = por %p72, %p73
    %p76 = scmp.ne.s32.totalorder %s61, %s75
    %p77 = scmp.eq.s32.totalorder %s16, 0
    %p78 = por %p76, %p77
    %s80 = sadd.s32 %s79, 1
    %p83 = scmp.eq.s32.totalorder %s10, 1
    %p84 = scmp.ne.s32.totalorder %s79, %s81
    %p85 = scmp.eq.s32.totalorder %s10, 0
    %p86 = por %p84, %p85
    %p87 = scmp.ne.s32.totalorder %s79, %s81
    %p88 = scmp.eq.s32.totalorder %s15, 1
    %p89 = por %p87, %p88
    %p90 = scmp.ne.s32.totalorder %s81, %s82
    %p91 = scmp.eq.s32.totalorder %s15, 0
    %p92 = por %p90, %p91
    %p93 = scmp.ne.s32.totalorder %s81, %s82
    %p94 = scmp.eq.s32.totalorder %s16, 1
    %p95 = por %p93, %p94
    %p97 = scmp.ne.s32.totalorder %s82, %s96
    %p98 = scmp.eq.s32.totalorder %s16, 0
    %p99 = por %p97, %p98
    %s100 = ssub.s32 %s18, %s25
    %p101 = scmp.eq.s32.totalorder %s100, 0
    %s103 = sadd.s32 %s102, 1
    %s104 = scalar_select %p101, %s102, %s103
    %p107 = pneg %p101
    %p108 = scmp.eq.s32.totalorder %s10, 1
    %p109 = por %p107, %p108
    %p110 = scmp.ne.s32.totalorder %s102, %s105
    %p111 = scmp.eq.s32.totalorder %s10, 0
    %p112 = por %p110, %p111
    %p113 = scmp.ne.s32.totalorder %s102, %s105
    %p114 = scmp.eq.s32.totalorder %s15, 1
    %p115 = por %p113, %p114
    %p116 = scmp.ne.s32.totalorder %s105, %s106
    %p117 = scmp.eq.s32.totalorder %s15, 0
    %p118 = por %p116, %p117
    %p119 = scmp.ne.s32.totalorder %s105, %s106
    %p120 = scmp.eq.s32.totalorder %s16, 1
    %p121 = por %p119, %p120
    %p123 = scmp.ne.s32.totalorder %s106, %s122
    %p124 = scmp.eq.s32.totalorder %s16, 0
    %p125 = por %p123, %p124
    %s126 = ssub.s32 %s17, %s29
    %s127 = ssub.s32 %s18, %s25
    %s128 = sor.u32 %s126, %s127
    %p129 = scmp.eq.s32.totalorder %s128, 0
    %s131 = sadd.s32 %s130, 1
    %s132 = scalar_select %p129, %s130, %s131
    %p135 = pneg %p129
    %p136 = scmp.eq.s32.totalorder %s10, 1
    %p137 = por %p135, %p136
    %p138 = scmp.ne.s32.totalorder %s130, %s133
    %p139 = scmp.eq.s32.totalorder %s10, 0
    %p140 = por %p138, %p139
    %p141 = scmp.ne.s32.totalorder %s130, %s133
    %p142 = scmp.eq.s32.totalorder %s15, 1
    %p143 = por %p141, %p142
    %p144 = scmp.ne.s32.totalorder %s133, %s134
    %p145 = scmp.eq.s32.totalorder %s15, 0
    %p146 = por %p144, %p145
    %p147 = scmp.ne.s32.totalorder %s133, %s134
    %p148 = scmp.eq.s32.totalorder %s16, 1
    %p149 = por %p147, %p148
    %p151 = scmp.ne.s32.totalorder %s134, %s150
    %p152 = scmp.eq.s32.totalorder %s16, 0
    %p153 = por %p151, %p152
    %p154 = scmp.le.s32.totalorder 1, %s10
    %p155 = scmp.lt.s32.totalorder %s10, 3
    %p156 = pnand %p154, %p155
    %p157 = pneg %p156
    // Predicated region
    $region9: #{tpu_custom_call.1} parent=5 // pred_check
      _
    $region10: #{tpu_custom_call.1} parent=5 // pred_check_branch
      %159 = sbr.rel (%p156) target = $region12
    $region11: #{tpu_custom_call.1} parent=5 // pred_region
      %s160 = ssub.s32 %s10, 1
      // Predicated region
      $region13: #{tpu_custom_call.1} parent=11 // pred_check
        %p161 = pneg %p71
      $region14: #{tpu_custom_call.1} parent=11 // pred_check_branch
        %163 = sbr.rel (%p161) target = $region16
      $region15: #{tpu_custom_call.1} parent=11 // pred_region
        _
      $region16: #{tpu_custom_call.1} parent=11 // pred_fallthru
        _
      // Predicated region
      $region17: #{tpu_custom_call.1} parent=11 // pred_check
        %p164 = pneg %p92
      $region18: #{tpu_custom_call.1} parent=11 // pred_check_branch
        %166 = sbr.rel (%p164) target = $region20
      $region19: #{tpu_custom_call.1} parent=11 // pred_region
        _
      $region20: #{tpu_custom_call.1} parent=11 // pred_fallthru
        _
      // Predicated region
      $region21: #{tpu_custom_call.1} parent=11 // pred_check
        %p167 = pneg %p118
      $region22: #{tpu_custom_call.1} parent=11 // pred_check_branch
        %169 = sbr.rel (%p167) target = $region24
      $region23: #{tpu_custom_call.1} parent=11 // pred_region
        %s170 = smul.u32 2, %s20
        %p171 = scmp.lt.s32.totalorder %s170, 1
        %s172 = scalar_select %p171, %s170, 1
        %s173 = smul.addr %s172, 2
        %s174 = scalar_lea.vmem %s3, %s173
        %s175 = smul.u32 2, %s20
      $region24: #{tpu_custom_call.1} parent=11 // pred_fallthru
        _
    $region12: #{tpu_custom_call.1} parent=5 // pred_fallthru
      _
    %p176 = scmp.lt.s32.totalorder %s10, 2
    // Predicated region
    $region25: #{tpu_custom_call.1} parent=5 // pred_check
      %p177 = pneg %p176
    $region26: #{tpu_custom_call.1} parent=5 // pred_check_branch
      %179 = sbr.rel (%p177) target = $region28
    $region27: #{tpu_custom_call.1} parent=5 // pred_region
      // Predicated region
      $region29: #{tpu_custom_call.1} parent=27 // pred_check
        %p180 = pneg %p44
      $region30: #{tpu_custom_call.1} parent=27 // pred_check_branch
        %182 = sbr.rel (%p180) target = $region32
      $region31: #{tpu_custom_call.1} parent=27 // pred_region
        %s183 = smul.u32 2, %s18
        %p184 = scmp.lt.s32.totalorder %s17, 1
        %s185 = scalar_select %p184, %s17, 1
        %p186 = scmp.lt.s32.totalorder %s183, 1
        %s187 = scalar_select %p186, %s183, 1
        %s188 = smul.addr %s185, 2
        %s189 = sadd.s32 %s187, %s188
        %s190 = smul.addr %s189, 4
        %s191 = scalar_lea.vmem %s0, %s190
        %s192 = smul.u32 2, %s18
      $region32: #{tpu_custom_call.1} parent=27 // pred_fallthru
        _
    $region28: #{tpu_custom_call.1} parent=5 // pred_fallthru
      _
    %p193 = scmp.le.s32.totalorder 1, %s10
    %p194 = scmp.lt.s32.totalorder %s10, 3
    %p195 = pnand %p193, %p194
    %p196 = pneg %p195
    // Predicated region
    $region33: #{tpu_custom_call.1} parent=5 // pred_check
      _
    $region34: #{tpu_custom_call.1} parent=5 // pred_check_branch
      %198 = sbr.rel (%p195) target = $region36
    $region35: #{tpu_custom_call.1} parent=5 // pred_region
      %s199 = ssub.s32 %s10, 1
      %s200 = smul.u32 2, %s20
      %p201 = scmp.lt.s32.totalorder %s19, 1
      %s202 = scalar_select %p201, %s19, 1
      %p203 = scmp.lt.s32.totalorder %s200, 1
      %s204 = scalar_select %p203, %s200, 1
      %s205 = smul.addr %s202, 2
      %s206 = sadd.s32 %s204, %s205
      %s207 = smul.addr %s206, 4
      %s208 = scalar_lea.vmem %s0, %s207
      %p209 = pneg %p50
      %p210 = pneg %p47
      %p211 = pneg %p71
      %p212 = pneg %p68
      %p213 = pneg %p92
      %p214 = pneg %p89
      %s215 = smul.u32 2, %s20
      %p216 = scmp.lt.s32.totalorder %s215, 1
      %s217 = scalar_select %p216, %s215, 1
      %s218 = smul.addr %s217, 2
      %s219 = scalar_lea.vmem %s3, %s218
      %p220 = pneg %p118
      %p221 = pneg %p115
      %p222 = pneg %p146
      %p223 = pneg %p143
      %s224 = smul.u32 2, %s20
      %p225 = scmp.lt.s32.totalorder %s19, 1
      %s226 = scalar_select %p225, %s19, 1
      %p227 = scmp.lt.s32.totalorder %s224, 1
      %s228 = scalar_select %p227, %s224, 1
      %s229 = smul.addr %s226, 6
      %s230 = sadd.s32 %s228, %s229
      %s231 = smul.addr %s230, 8
      %s232 = scalar_lea.vmem %s4, %s231
      %s233 = smul.u32 2, %s20
      %p234 = scmp.lt.s32.totalorder %s19, 1
      %s235 = scalar_select %p234, %s19, 1
      %p236 = scmp.lt.s32.totalorder %s233, 1
      %s237 = scalar_select %p236, %s233, 1
      %s238 = smul.addr %s235, 2
      %s239 = sadd.s32 %s237, %s238
      %s240 = smul.addr %s239, 4
      %s241 = scalar_lea.vmem %s0, %s240
      %s242 = smul.u32 2, %s20
      %s243 = smul.u32 2, %s20
      %p244 = scmp.lt.s32.totalorder %s243, 1
      %s245 = scalar_select %p244, %s243, 1
      %s246 = smul.addr %s245, 2
      %s247 = scalar_lea.vmem %s3, %s246
      %s248 = smul.u32 2, %s20
      %s249 = smul.u32 2, %s20
      %p250 = scmp.lt.s32.totalorder %s19, 1
      %s251 = scalar_select %p250, %s19, 1
      %p252 = scmp.lt.s32.totalorder %s249, 1
      %s253 = scalar_select %p252, %s249, 1
      %s254 = smul.addr %s251, 6
      %s255 = sadd.s32 %s253, %s254
      %s256 = smul.addr %s255, 8
      %s257 = scalar_lea.vmem %s4, %s256
      %s258 = smul.u32 2, %s20
      %v259 = vld [vmem:[%s241] sm:$0xff]
      %v260 = vld [vmem:[%s1] sm:$0xff]
      %v261 = vld [vmem:[%s1 + $0x8] sm:$0xff]
      %v262 = vld [vmem:[%s1 + $0x10] sm:$0x1f]
      %v263 = vld [vmem:[%s2] sm:$0xff]
      %v264 = vld [vmem:[%s2 + $0x8] sm:$0xff]
      %v265 = vld [vmem:[%s2 + $0x10] sm:$0x1f]
      %267 = vset.pattern.permute.xlu0 5
      %268 = vperm.xlu0 %267, %v263
      %v269 = vpop.permute.xlu0 %268
      %272 = vset.pattern.permute.xlu0 5
      %273 = vperm.xlu0 %272, %v264
      %v274 = vpop.permute.xlu0 %273
      %277 = vset.pattern.permute.xlu0 5
      %278 = vperm.xlu0 %277, %v265
      %v279 = vpop.permute.xlu0 %278
      %v282 = vcombine.high %v259, %v259
      %vm283 = vcmask 31744
      %v285 = vsel %vm283, %v260, 0
      %v288 = vsel %vm283, %v261, 0
      %v291 = vsel %vm283, %v262, 0
      %vm293 = vcmask 1043456
      %v294 = vsel %vm293, %v259, 0
      %v296 = vsel %vm293, %v282, 0
      %298 = vmatprep.subr.mxu0 0.0
      %299 = vmatpush1.msra.mxu0 0.0
      %300 = vmatprep.subr.mxu0 0.0
      %301 = vmatpush1.msra.mxu0 0.0
      %302 = vmatprep.subr.mxu0 0.0
      %303 = vmatpush1.msra.mxu0 0.0
      %304 = vmatprep.subr.mxu0 0.0
      %305 = vmatpush1.msra.mxu0 0.0
      %306 = vmatprep.subr.mxu0 0.0
      %307 = vmatpush1.msra.mxu0 0.0
      %308 = vmatprep.subr.mxu0 0.0
      %309 = vmatpush1.msra.mxu0 0.0
      %310 = vmatprep.subr.mxu0 0.0
      %311 = vmatpush1.msra.mxu0 0.0
      %312 = vmatprep.subr.mxu0 0.0
      %313 = vmatpush1.msra.mxu0 0.0
      %314 = vmatprep.subr.mxu0 0.0
      %315 = vmatpush1.msra.mxu0 0.0
      %316 = vmatprep.subr.mxu0 0.0
      %317 = vmatpush1.msra.mxu0 0.0
      %318 = vmatprep.subr.mxu0 0.0
      %319 = vmatpush1.msra.mxu0 0.0
      %320 = vmatprep.subr.mxu0 0.0
      %321 = vmatpush1.msra.mxu0 0.0
      %322 = vmatprep.subr.mxu0 0.0
      %323 = vmatpush1.msra.mxu0 0.0
      %324 = vmatprep.subr.mxu0 0.0
      %325 = vmatpush1.msra.mxu0 0.0
      %326 = vmatprep.subr.mxu0 0.0
      %327 = vmatpush1.msra.mxu0 0.0
      %328 = vmatprep.subr.mxu0 %v296
      %329 = vmatpush1.msra.mxu0 %v294
      %330 = vmatprep.subr.mxu0 0.0
      %331 = vmatpush2.msra.mxu0 0.0
      %332 = vmatprep.subr.mxu0 0.0
      %333 = vmatpush2.msra.mxu0 0.0
      %334 = vmatprep.subr.mxu0 0.0
      %335 = vmatpush2.msra.mxu0 0.0
      %336 = vmatprep.subr.mxu0 0.0
      %337 = vmatpush2.msra.mxu0 0.0
      %338 = vmatprep.subr.mxu0 0.0
      %339 = vmatpush2.msra.mxu0 0.0
      %340 = vmatprep.subr.mxu0 0.0
      %341 = vmatpush2.msra.mxu0 0.0
      %342 = vmatprep.subr.mxu0 0.0
      %343 = vmatpush2.msra.mxu0 0.0
      %344 = vmatprep.subr.mxu0 0.0
      %345 = vmatpush2.msra.mxu0 0.0
      %346 = vmatprep.subr.mxu0 0.0
      %347 = vmatpush2.msra.mxu0 0.0
      %348 = vmatprep.subr.mxu0 0.0
      %349 = vmatpush2.msra.mxu0 0.0
      %350 = vmatprep.subr.mxu0 0.0
      %351 = vmatpush2.msra.mxu0 0.0
      %352 = vmatprep.subr.mxu0 0.0
      %353 = vmatpush2.msra.mxu0 0.0
      %354 = vmatprep.subr.mxu0 0.0
      %355 = vmatpush2.msra.mxu0 0.0
      %356 = vmatprep.subr.mxu0 0.0
      %357 = vmatpush2.msra.mxu0 0.0
      %358 = vmatprep.subr.mxu0 0.0
      %359 = vmatpush2.msra.mxu0 0.0
      %360 = vmatprep.subr.mxu0 0.0
      %361 = vmatpush2.msra.mxu0 0.0
      %362 = vmatprep.mubr.f32.mxu0 0.0
      %363 = vmatmul.mubr.f32.gmra.mxu0 %v285
      %v364 = vpop.f32.mrf.mxu0
      %v365 = vadd.f32 %v269, %v364
      %v366 = vpop.f32.mrf.mxu0
      %v367 = vadd.f32 %v269, %v366
      %368 = vmatprep.mubr.f32.mxu0 0.0
      %369 = vmatmul.mubr.f32.gmra.mxu0 %v288
      %v370 = vpop.f32.mrf.mxu0
      %v371 = vadd.f32 %v274, %v370
      %v372 = vpop.f32.mrf.mxu0
      %v373 = vadd.f32 %v274, %v372
      %374 = vmatprep.mubr.f32.mxu0 0.0
      %375 = vmatmul.mubr.f32.gmra.mxu0 %v291
      %v376 = vpop.f32.mrf.mxu0
      %v377 = vadd.f32 %v279, %v376
      %v378 = vpop.f32.mrf.mxu0
      %v379 = vadd.f32 %v279, %v378
      %380 = vdwg.mxu0
      %v381 = vld [vmem:[%s2] sm:$0xff]
      %v382 = vld [vmem:[%s2 + $0x8] sm:$0xff]
      %v383 = vld [vmem:[%s2 + $0x10] sm:$0x1f]
      %vm384 = vcmp.gt.f32.partialorder %v381, 0.5
      %vm385 = vcmp.gt.f32.partialorder %v382, 0.5
      %vm386 = vcmp.gt.f32.partialorder %v383, 0.5
      %v387 = vxor.u32 %v365, 2147483648
      %v388 = vxor.u32 %v367, 2147483648
      %v389 = vxor.u32 %v371, 2147483648
      %v390 = vxor.u32 %v373, 2147483648
      %v391 = vxor.u32 %v377, 2147483648
      %v392 = vxor.u32 %v379, 2147483648
      %v393 = vmul.f32 %v387, 1.442695
      %v394 = vpow.pop %v393
      %v395 = vmul.f32 %v388, 1.442695
      %v396 = vpow.pop %v395
      %v397 = vmul.f32 %v389, 1.442695
      %v398 = vpow.pop %v397
      %v399 = vmul.f32 %v390, 1.442695
      %v400 = vpow.pop %v399
      %v401 = vmul.f32 %v391, 1.442695
      %v402 = vpow.pop %v401
      %v403 = vmul.f32 %v392, 1.442695
      %v404 = vpow.pop %v403
      %v405 = vadd.f32 %v394, 1.0
      %v406 = vadd.f32 %v396, 1.0
      %v407 = vadd.f32 %v398, 1.0
      %v408 = vadd.f32 %v400, 1.0
      %v409 = vadd.f32 %v402, 1.0
      %v410 = vadd.f32 %v404, 1.0
      %v411 = vrcp.pop %v405
      %v412 = vmul.f32 1.0, %v411
      %v413 = vrcp.pop %v406
      %v414 = vmul.f32 1.0, %v413
      %v415 = vrcp.pop %v407
      %v416 = vmul.f32 1.0, %v415
      %v417 = vrcp.pop %v408
      %v418 = vmul.f32 1.0, %v417
      %v419 = vrcp.pop %v409
      %v420 = vmul.f32 1.0, %v419
      %v421 = vrcp.pop %v410
      %v422 = vmul.f32 1.0, %v421
      %v423 = vsel %vm384, 1, 0
      %v424 = vsel %vm385, 1, 0
      %v425 = vsel %vm386, 1, 0
      %426 = vset.pattern.permute.xlu0 0
      %427 = vperm.xlu0 %426, %v423
      %v428 = vpop.permute.xlu0 %427
      %429 = vset.pattern.permute.xlu0 0
      %430 = vperm.xlu0 %429, %v424
      %v431 = vpop.permute.xlu0 %430
      %432 = vset.pattern.permute.xlu0 0
      %433 = vperm.xlu0 %432, %v425
      %v434 = vpop.permute.xlu0 %433
      %vm435 = vcmp.eq.s32.totalorder %v428, 1
      %vm436 = vcmp.eq.s32.totalorder %v431, 1
      %vm437 = vcmp.eq.s32.totalorder %v434, 1
      %v438 = vsel %vm435, %v412, %v365
      %v439 = vsel %vm435, %v414, %v367
      %v440 = vsel %vm436, %v416, %v371
      %v441 = vsel %vm436, %v418, %v373
      %v442 = vsel %vm437, %v420, %v377
      %v443 = vsel %vm437, %v422, %v379
      %v444 = vld [vmem:[%s247] ss:$2 sm:$0x3]
      %446 = vset.pattern.permute.xlu0 2
      %447 = vperm.xlu0 %446, %v381
      %v448 = vpop.permute.xlu0 %447
      %451 = vset.pattern.permute.xlu0 2
      %452 = vperm.xlu0 %451, %v382
      %v453 = vpop.permute.xlu0 %452
      %456 = vset.pattern.permute.xlu0 2
      %457 = vperm.xlu0 %456, %v383
      %v458 = vpop.permute.xlu0 %457
      %v461 = vlaneseq
      %v462 = vshrl.u32 %v461, 7
      %v463 = vsub.s32 0, %v462
      %v464 = vrot.slane %v444, %v463
      %v465 = vlaneseq
      %v466 = vshrl.u32 %v465, 7
      %v467 = vsub.s32 1, %v466
      %v468 = vrot.slane %v444, %v467
      %v471 = vmul.f32 %v448, %v464
      %v472 = vmul.f32 %v448, %v468
      %v473 = vmul.f32 %v453, %v464
      %v474 = vmul.f32 %v453, %v468
      %v475 = vmul.f32 %v458, %v464
      %v476 = vmul.f32 %v458, %v468
      %v477 = vadd.f32 %v438, %v471
      %v478 = vadd.f32 %v439, %v472
      %v479 = vadd.f32 %v440, %v473
      %v480 = vadd.f32 %v441, %v474
      %v481 = vadd.f32 %v442, %v475
      %v482 = vadd.f32 %v443, %v476
      %s483 = scalar_lea.vmem %s247, 1
      %v484 = vld [vmem:[%s483] ss:$2 sm:$0x3]
      %485 = vset.pattern.permute.xlu0 3
      %486 = vperm.xlu0 %485, %v381
      %v487 = vpop.permute.xlu0 %486
      %489 = vset.pattern.permute.xlu0 3
      %490 = vperm.xlu0 %489, %v382
      %v491 = vpop.permute.xlu0 %490
      %493 = vset.pattern.permute.xlu0 3
      %494 = vperm.xlu0 %493, %v383
      %v495 = vpop.permute.xlu0 %494
      %v498 = vlaneseq
      %v499 = vshrl.u32 %v498, 7
      %v500 = vsub.s32 0, %v499
      %v501 = vrot.slane %v484, %v500
      %v502 = vlaneseq
      %v503 = vshrl.u32 %v502, 7
      %v504 = vsub.s32 1, %v503
      %v505 = vrot.slane %v484, %v504
      %v508 = vmul.f32 %v487, %v501
      %v509 = vmul.f32 %v487, %v505
      %v510 = vmul.f32 %v491, %v501
      %v511 = vmul.f32 %v491, %v505
      %v512 = vmul.f32 %v495, %v501
      %v513 = vmul.f32 %v495, %v505
      %v514 = vadd.f32 %v477, %v508
      %v515 = vadd.f32 %v478, %v509
      %v516 = vadd.f32 %v479, %v510
      %v517 = vadd.f32 %v480, %v511
      %v518 = vadd.f32 %v481, %v512
      %v519 = vadd.f32 %v482, %v513
      %520 = vset.pattern.permute.xlu0 6
      %521 = vperm.xlu0 %520, %v423
      %v522 = vpop.permute.xlu0 %521
      %523 = vset.pattern.permute.xlu0 6
      %524 = vperm.xlu0 %523, %v424
      %v525 = vpop.permute.xlu0 %524
      %526 = vset.pattern.permute.xlu0 6
      %527 = vperm.xlu0 %526, %v425
      %v528 = vpop.permute.xlu0 %527
      %vm529 = vcmp.eq.s32.totalorder %v522, 1
      %vm530 = vcmp.eq.s32.totalorder %v525, 1
      %vm531 = vcmp.eq.s32.totalorder %v528, 1
      %v532 = vsel %vm529, %v514, 0.0
      %v533 = vsel %vm529, %v515, 0.0
      %v534 = vsel %vm530, %v516, 0.0
      %v535 = vsel %vm530, %v517, 0.0
      %v536 = vsel %vm531, %v518, 0.0
      %v537 = vsel %vm531, %v519, 0.0
      %v538 = vmul.f32 %v532, 1.442695
      %v539 = vpow.pop %v538
      %v540 = vmul.f32 %v533, 1.442695
      %v541 = vpow.pop %v540
      %v542 = vmul.f32 %v534, 1.442695
      %v543 = vpow.pop %v542
      %v544 = vmul.f32 %v535, 1.442695
      %v545 = vpow.pop %v544
      %v546 = vmul.f32 %v536, 1.442695
      %v547 = vpow.pop %v546
      %v548 = vmul.f32 %v537, 1.442695
      %v549 = vpow.pop %v548
      %550 = vset.pattern.permute.xlu0 1
      %551 = vperm.xlu0 %550, %v381
      %v552 = vpop.permute.xlu0 %551
      %554 = vset.pattern.permute.xlu0 1
      %555 = vperm.xlu0 %554, %v382
      %v556 = vpop.permute.xlu0 %555
      %558 = vset.pattern.permute.xlu0 1
      %559 = vperm.xlu0 %558, %v383
      %v560 = vpop.permute.xlu0 %559
      %v562 = vmul.f32 %v552, %v539
      %v563 = vmul.f32 %v552, %v541
      %v564 = vmul.f32 %v556, %v543
      %v565 = vmul.f32 %v556, %v545
      %v566 = vmul.f32 %v560, %v547
      %v567 = vmul.f32 %v560, %v549
      %v568 = vadd.f32 %v514, %v562
      %v569 = vadd.f32 %v515, %v563
      %v570 = vadd.f32 %v516, %v564
      %v571 = vadd.f32 %v517, %v565
      %v572 = vadd.f32 %v518, %v566
      %v573 = vadd.f32 %v519, %v567
      %574 = vset.pattern.permute.xlu0 4
      %575 = vperm.xlu0 %574, %v381
      %v576 = vpop.permute.xlu0 %575
      %578 = vset.pattern.permute.xlu0 4
      %579 = vperm.xlu0 %578, %v382
      %v580 = vpop.permute.xlu0 %579
      %582 = vset.pattern.permute.xlu0 4
      %583 = vperm.xlu0 %582, %v383
      %v584 = vpop.permute.xlu0 %583
      %v586 = vmul.f32 %v568, %v576
      %v587 = vmul.f32 %v569, %v576
      %v588 = vmul.f32 %v570, %v580
      %v589 = vmul.f32 %v571, %v580
      %v590 = vmul.f32 %v572, %v584
      %v591 = vmul.f32 %v573, %v584
      %592 = vst [vmem:[%s257] sm:$0xff] %v586
      %593 = vst [vmem:[%s257 + $0x8] sm:$0xff] %v587
      %594 = vst [vmem:[%s257 + $0x10] sm:$0xff] %v588
      %595 = vst [vmem:[%s257 + $0x18] sm:$0xff] %v589
      %596 = vst [vmem:[%s257 + $0x20] sm:$0x1f] %v590
      %597 = vst [vmem:[%s257 + $0x28] sm:$0x1f] %v591
      %s598 = smul.u32 2, %s20
      %p599 = scmp.lt.s32.totalorder %s19, 1
      %s600 = scalar_select %p599, %s19, 1
      %p601 = scmp.lt.s32.totalorder %s598, 1
      %s602 = scalar_select %p601, %s598, 1
      %s603 = smul.addr %s600, 6
      %s604 = sadd.s32 %s602, %s603
      %s605 = smul.addr %s604, 8
      %s606 = scalar_lea.vmem %s4, %s605
      // Predicated region
      $region37: #{tpu_custom_call.1} parent=35 // pred_check
        %p607 = pneg %p143
      $region38: #{tpu_custom_call.1} parent=35 // pred_check_branch
        %609 = sbr.rel (%p607) target = $region40
      $region39: #{tpu_custom_call.1} parent=35 // pred_region
        %s610 = smul.u32 2, %s20
      $region40: #{tpu_custom_call.1} parent=35 // pred_fallthru
        _
    $region36: #{tpu_custom_call.1} parent=5 // pred_fallthru
      _
    %p611 = scmp.le.s32.totalorder 2, %s10
    // Predicated region
    $region41: #{tpu_custom_call.1} parent=5 // pred_check
      %p612 = pneg %p611
    $region42: #{tpu_custom_call.1} parent=5 // pred_check_branch
      %614 = sbr.rel (%p612) target = $region44
    $region43: #{tpu_custom_call.1} parent=5 // pred_region
      %s615 = ssub.s32 %s10, 2
      // Predicated region
      $region45: #{tpu_custom_call.1} parent=43 // pred_check
        %p616 = pneg %p149
      $region46: #{tpu_custom_call.1} parent=43 // pred_check_branch
        %618 = sbr.rel (%p616) target = $region48
      $region47: #{tpu_custom_call.1} parent=43 // pred_region
        %s619 = smul.u32 2, %s22
        %p620 = scmp.lt.s32.totalorder %s21, 1
        %s621 = scalar_select %p620, %s21, 1
        %p622 = scmp.lt.s32.totalorder %s619, 1
        %s623 = scalar_select %p622, %s619, 1
        %s624 = smul.addr %s621, 6
        %s625 = sadd.s32 %s623, %s624
        %s626 = smul.addr %s625, 8
        %s627 = scalar_lea.vmem %s4, %s626
      $region48: #{tpu_custom_call.1} parent=43 // pred_fallthru
        _
    $region44: #{tpu_custom_call.1} parent=5 // pred_fallthru
      _
  $region6: #{tpu_custom_call.1} parent=0 // loop_footer
    %s14 = sadd.s32 1, %s10
  $region7: #{tpu_custom_call.1} parent=0 // loop_footer_branch
    %9 = sbr.rel target = $region3
  $region8: #{tpu_custom_call.1} parent=0 // loop_exit
    _

</llo_original>
